<compile_context>
chip_gen: v7x
topology: tpu7x:2x2x1
jax: 0.10.0
libtpu: 0.0.40
codegen_flags: <defaults>
</compile_context>

<pallas_src>
import functools

import jax
import jax.numpy as jnp
from jax import lax
from jax.experimental import pallas as pl
from jax.experimental.pallas import tpu as pltpu

LR = 0.01


def _csgdm_kernel(gradt_ref, Mt_ref, momt_ref, newMt_ref, newmomt_ref, *, lr):
    # All refs are (Bt, p, n): batch-blocked, transposed so n is the lane axis.
    gradt = gradt_ref[...]
    Mt = Mt_ref[...]
    momt = momt_ref[...]
    p = Mt.shape[1]

    # proj = (M M^T) grad  reassociated as  M (M^T grad).
    # In transposed layout:
    #   G2    = grad^T M       (Bt, p, p)  -- contraction over n on the MXU
    #   projt = G2 @ M^T       (Bt, p, n)  -- p-wide contraction done as p
    #                                          broadcast-FMAs on the VPU
    G2 = lax.dot_general(gradt, Mt, (((2,), (2,)), ((0,), (0,))),
                         preferred_element_type=jnp.float32)
    projt = G2[:, :, 0:1] * Mt[:, 0:1, :]
    for j in range(1, p):
        projt = projt + G2[:, :, j:j + 1] * Mt[:, j:j + 1, :]

    mom_Mt = 0.1 * (momt - projt) + lr * (gradt - projt)

    # Grassmann QR retraction via Cholesky-QR (A is near-orthonormal, cond ~ 1):
    #   A = M - lr * mom_M ;  Gram = A^T A = R^T R ;  L = chol(Gram) ;
    #   Q^T = L^{-1} A^T   (diag(R) = diag(L) > 0, matching sign-corrected qr).
    At = Mt - lr * mom_Mt                                       # (Bt, p, n) == A^T
    Gram = lax.dot_general(At, At, (((2,), (2,)), ((0,), (0,))),
                           preferred_element_type=jnp.float32)  # (Bt, p, p)

    # Unrolled Cholesky on the tiny (p, p) Gram; entries kept as (Bt, 1, 1).
    L = [[None] * p for _ in range(p)]
    Linv_diag = [None] * p
    for j in range(p):
        s = Gram[:, j:j + 1, j:j + 1]
        for k in range(j):
            s = s - L[j][k] * L[j][k]
        s = jnp.maximum(s, 1e-30)            # guard degenerate columns
        L[j][j] = jnp.sqrt(s)
        Linv_diag[j] = 1.0 / L[j][j]
        for i in range(j + 1, p):
            t = Gram[:, i:i + 1, j:j + 1]
            for k in range(j):
                t = t - L[i][k] * L[j][k]
            L[i][j] = t * Linv_diag[j]

    # Forward substitution Q^T = L^{-1} A^T; each row is a lane-dense length-n
    # vector written directly into the output ref (no concatenate).
    qrows = []
    for i in range(p):
        v = At[:, i:i + 1, :]                # (Bt, 1, n)
        for k in range(i):
            v = v - L[i][k] * qrows[k]
        v = v * Linv_diag[i]
        qrows.append(v)
        newMt_ref[:, i:i + 1, :] = v

    newmomt_ref[...] = mom_Mt


def hand_optimizee_csgdm(grad, M, state, mom, lr=LR):
    """Forward pass of Hand_Optimizee_Model_csgdm. Returns (M_new, state, mom_M)."""
    B, n, p = M.shape

    # Flip to (B, p, n) so n sits on the 128-lane axis inside the kernel.
    gradt = jnp.swapaxes(grad.astype(jnp.float32), 1, 2)
    Mt = jnp.swapaxes(M.astype(jnp.float32), 1, 2)
    momt = jnp.swapaxes(mom.astype(jnp.float32), 1, 2)

    # Pick the largest batch block (divisor of B) whose double-buffered footprint
    # (3 inputs + 2 outputs, 2 buffers each) stays within a conservative VMEM
    # budget that also fits v7x's smaller VMEM.
    bytes_per_item = 5 * 2 * p * n * 4
    budget = 8 * 1024 * 1024
    cap = max(1, budget // bytes_per_item)
    Bt = 1
    for d in range(1, B + 1):
        if B % d == 0 and d <= cap:
            Bt = d
    grid = (B // Bt,)

    spec = pl.BlockSpec((Bt, p, n), lambda b: (b, 0, 0))
    kernel = functools.partial(_csgdm_kernel, lr=float(lr))

    newMt, newmomt = pl.pallas_call(
        kernel,
        out_shape=(jax.ShapeDtypeStruct((B, p, n), jnp.float32),
                   jax.ShapeDtypeStruct((B, p, n), jnp.float32)),
        grid_spec=pltpu.PrefetchScalarGridSpec(
            num_scalar_prefetch=0,
            grid=grid,
            in_specs=[spec, spec, spec],
            out_specs=[spec, spec],
        ),
        compiler_params=pltpu.CompilerParams(
            dimension_semantics=("parallel",)),
    )(gradt, Mt, momt)

    new_M = jnp.swapaxes(newMt, 1, 2)
    new_mom = jnp.swapaxes(newmomt, 1, 2)
    return new_M, state, new_mom


def _ref_forward(grad, M, state, mom, lr=LR):
    proj = jnp.einsum('bij,bkj,bkl->bil', M, M, grad)      # (M M^T) grad
    mom_M = 0.1 * (mom - proj) + lr * (grad - proj)
    A = M - lr * mom_M
    Q, R = jnp.linalg.qr(A)
    sign = jnp.sign(jnp.diagonal(R, axis1=-2, axis2=-1))
    sign = jnp.where(sign == 0, 1.0, sign)
    Q = Q * sign[:, None, :]
    return Q, state, mom_M


if __name__ == "__main__":
    B, n, p = 2, 16, 4
    key = jax.random.PRNGKey(0)
    k1, k2, k3, k4 = jax.random.split(key, 4)

    # M: a batch of orthonormal (Stiefel/Grassmann representative) matrices.
    M0 = jnp.linalg.qr(jax.random.normal(k1, (B, n, p), dtype=jnp.float32))[0]
    grad = jax.random.normal(k2, (B, n, p), dtype=jnp.float32)
    mom = jax.random.normal(k3, (B, n, p), dtype=jnp.float32) * 0.1
    state = jax.random.normal(k4, (B, n, p), dtype=jnp.float32)

    M_new, state_out, mom_new = hand_optimizee_csgdm(grad, M0, state, mom, LR)
    jax.block_until_ready((M_new, state_out, mom_new))

    M_ref, _, mom_ref = _ref_forward(grad, M0, state, mom, LR)
    assert jnp.all(jnp.isfinite(M_new)) and jnp.all(jnp.isfinite(mom_new))
    assert jnp.allclose(mom_new, mom_ref, atol=1e-4), "momentum mismatch"
    assert jnp.allclose(M_new, M_ref, atol=1e-4), "retraction mismatch"
    assert jnp.allclose(state_out, state), "state must pass through unchanged"

    print("KERNEL_OK")
</pallas_src>

<mosaic_0001>
module attributes {stable_mosaic.version = 11 : i64} {
  func.func @_csgdm_kernel(%arg0: i32, %arg1: memref<2x4x16xf32, #tpu.memory_space<vmem>>, %arg2: memref<2x4x16xf32, #tpu.memory_space<vmem>>, %arg3: memref<2x4x16xf32, #tpu.memory_space<vmem>>, %arg4: memref<2x4x16xf32, #tpu.memory_space<vmem>>, %arg5: memref<2x4x16xf32, #tpu.memory_space<vmem>>) attributes {dimension_semantics = [#tpu.dimension_semantics<parallel>], iteration_bounds = array<i64: 1>, scalar_prefetch = 0 : i64, scratch_operands = 0 : i64, tpu.core_type = #tpu.core_type<tc>, window_params = [{transform_indices = @transform_0, window_bounds = array<i64: 2, 4, 16>}, {transform_indices = @transform_1, window_bounds = array<i64: 2, 4, 16>}, {transform_indices = @transform_2, window_bounds = array<i64: 2, 4, 16>}, {transform_indices = @transform_3, window_bounds = array<i64: 2, 4, 16>}, {transform_indices = @transform_4, window_bounds = array<i64: 2, 4, 16>}]} {
    %c0 = arith.constant 0 : index
    %c0_0 = arith.constant 0 : index
    %c0_1 = arith.constant 0 : index
    %0 = vector.load %arg1[%c0, %c0_0, %c0_1] : memref<2x4x16xf32, #tpu.memory_space<vmem>>, vector<2x4x16xf32>
    %c0_2 = arith.constant 0 : index
    %c0_3 = arith.constant 0 : index
    %c0_4 = arith.constant 0 : index
    %1 = vector.load %arg2[%c0_2, %c0_3, %c0_4] : memref<2x4x16xf32, #tpu.memory_space<vmem>>, vector<2x4x16xf32>
    %c0_5 = arith.constant 0 : index
    %c0_6 = arith.constant 0 : index
    %c0_7 = arith.constant 0 : index
    %2 = vector.load %arg3[%c0_5, %c0_6, %c0_7] : memref<2x4x16xf32, #tpu.memory_space<vmem>>, vector<2x4x16xf32>
    %cst = arith.constant dense<0.000000e+00> : vector<2x4x4xf32>
    %3 = tpu.matmul %0, %1, %cst {dimension_numbers = #tpu.dot_dimension_numbers<[2], [2], [1], [1], [0, 0, 0, 1, 1, 1], [0], [0]>} : vector<2x4x16xf32>, vector<2x4x16xf32>, vector<2x4x4xf32> -> vector<2x4x4xf32>
    %4 = vector.extract_strided_slice %3 {offsets = [0, 0, 0], sizes = [2, 4, 1], strides = [1, 1, 1]} : vector<2x4x4xf32> to vector<2x4x1xf32>
    %5 = vector.extract_strided_slice %1 {offsets = [0, 0, 0], sizes = [2, 1, 16], strides = [1, 1, 1]} : vector<2x4x16xf32> to vector<2x1x16xf32>
    %6 = vector.broadcast %4 : vector<2x4x1xf32> to vector<2x4x16xf32>
    %7 = vector.broadcast %5 : vector<2x1x16xf32> to vector<2x4x16xf32>
    %8 = arith.mulf %6, %7 : vector<2x4x16xf32>
    %9 = vector.extract_strided_slice %3 {offsets = [0, 0, 1], sizes = [2, 4, 1], strides = [1, 1, 1]} : vector<2x4x4xf32> to vector<2x4x1xf32>
    %10 = vector.extract_strided_slice %1 {offsets = [0, 1, 0], sizes = [2, 1, 16], strides = [1, 1, 1]} : vector<2x4x16xf32> to vector<2x1x16xf32>
    %11 = vector.broadcast %9 : vector<2x4x1xf32> to vector<2x4x16xf32>
    %12 = vector.broadcast %10 : vector<2x1x16xf32> to vector<2x4x16xf32>
    %13 = arith.mulf %11, %12 : vector<2x4x16xf32>
    %14 = arith.addf %8, %13 : vector<2x4x16xf32>
    %15 = vector.extract_strided_slice %3 {offsets = [0, 0, 2], sizes = [2, 4, 1], strides = [1, 1, 1]} : vector<2x4x4xf32> to vector<2x4x1xf32>
    %16 = vector.extract_strided_slice %1 {offsets = [0, 2, 0], sizes = [2, 1, 16], strides = [1, 1, 1]} : vector<2x4x16xf32> to vector<2x1x16xf32>
    %17 = vector.broadcast %15 : vector<2x4x1xf32> to vector<2x4x16xf32>
    %18 = vector.broadcast %16 : vector<2x1x16xf32> to vector<2x4x16xf32>
    %19 = arith.mulf %17, %18 : vector<2x4x16xf32>
    %20 = arith.addf %14, %19 : vector<2x4x16xf32>
    %21 = vector.extract_strided_slice %3 {offsets = [0, 0, 3], sizes = [2, 4, 1], strides = [1, 1, 1]} : vector<2x4x4xf32> to vector<2x4x1xf32>
    %22 = vector.extract_strided_slice %1 {offsets = [0, 3, 0], sizes = [2, 1, 16], strides = [1, 1, 1]} : vector<2x4x16xf32> to vector<2x1x16xf32>
    %23 = vector.broadcast %21 : vector<2x4x1xf32> to vector<2x4x16xf32>
    %24 = vector.broadcast %22 : vector<2x1x16xf32> to vector<2x4x16xf32>
    %25 = arith.mulf %23, %24 : vector<2x4x16xf32>
    %26 = arith.addf %20, %25 : vector<2x4x16xf32>
    %27 = arith.subf %2, %26 : vector<2x4x16xf32>
    %cst_8 = arith.constant 1.000000e-01 : f32
    %28 = vector.broadcast %cst_8 : f32 to vector<2x4x16xf32>
    %29 = arith.mulf %28, %27 : vector<2x4x16xf32>
    %30 = arith.subf %0, %26 : vector<2x4x16xf32>
    %cst_9 = arith.constant 0.00999999977 : f32
    %31 = vector.broadcast %cst_9 : f32 to vector<2x4x16xf32>
    %32 = arith.mulf %31, %30 : vector<2x4x16xf32>
    %33 = arith.addf %29, %32 : vector<2x4x16xf32>
    %cst_10 = arith.constant 0.00999999977 : f32
    %34 = vector.broadcast %cst_10 : f32 to vector<2x4x16xf32>
    %35 = arith.mulf %34, %33 : vector<2x4x16xf32>
    %36 = arith.subf %1, %35 : vector<2x4x16xf32>
    %cst_11 = arith.constant dense<0.000000e+00> : vector<2x4x4xf32>
    %37 = tpu.matmul %36, %36, %cst_11 {dimension_numbers = #tpu.dot_dimension_numbers<[2], [2], [1], [1], [0, 0, 0, 1, 1, 1], [0], [0]>} : vector<2x4x16xf32>, vector<2x4x16xf32>, vector<2x4x4xf32> -> vector<2x4x4xf32>
    %38 = vector.extract_strided_slice %37 {offsets = [0, 0, 0], sizes = [2, 1, 1], strides = [1, 1, 1]} : vector<2x4x4xf32> to vector<2x1x1xf32>
    %cst_12 = arith.constant 1.000000e-30 : f32
    %39 = vector.broadcast %cst_12 : f32 to vector<2x1x1xf32>
    %40 = arith.maximumf %38, %39 : vector<2x1x1xf32>
    %41 = math.sqrt %40 : vector<2x1x1xf32>
    %cst_13 = arith.constant 1.000000e+00 : f32
    %42 = vector.broadcast %cst_13 : f32 to vector<2x1x1xf32>
    %43 = arith.divf %42, %41 : vector<2x1x1xf32>
    %44 = vector.extract_strided_slice %37 {offsets = [0, 1, 0], sizes = [2, 1, 1], strides = [1, 1, 1]} : vector<2x4x4xf32> to vector<2x1x1xf32>
    %45 = arith.mulf %44, %43 : vector<2x1x1xf32>
    %46 = vector.extract_strided_slice %37 {offsets = [0, 2, 0], sizes = [2, 1, 1], strides = [1, 1, 1]} : vector<2x4x4xf32> to vector<2x1x1xf32>
    %47 = arith.mulf %46, %43 : vector<2x1x1xf32>
    %48 = vector.extract_strided_slice %37 {offsets = [0, 3, 0], sizes = [2, 1, 1], strides = [1, 1, 1]} : vector<2x4x4xf32> to vector<2x1x1xf32>
    %49 = arith.mulf %48, %43 : vector<2x1x1xf32>
    %50 = vector.extract_strided_slice %37 {offsets = [0, 1, 1], sizes = [2, 1, 1], strides = [1, 1, 1]} : vector<2x4x4xf32> to vector<2x1x1xf32>
    %51 = arith.mulf %45, %45 : vector<2x1x1xf32>
    %52 = arith.subf %50, %51 : vector<2x1x1xf32>
    %cst_14 = arith.constant 1.000000e-30 : f32
    %53 = vector.broadcast %cst_14 : f32 to vector<2x1x1xf32>
    %54 = arith.maximumf %52, %53 : vector<2x1x1xf32>
    %55 = math.sqrt %54 : vector<2x1x1xf32>
    %cst_15 = arith.constant 1.000000e+00 : f32
    %56 = vector.broadcast %cst_15 : f32 to vector<2x1x1xf32>
    %57 = arith.divf %56, %55 : vector<2x1x1xf32>
    %58 = vector.extract_strided_slice %37 {offsets = [0, 2, 1], sizes = [2, 1, 1], strides = [1, 1, 1]} : vector<2x4x4xf32> to vector<2x1x1xf32>
    %59 = arith.mulf %47, %45 : vector<2x1x1xf32>
    %60 = arith.subf %58, %59 : vector<2x1x1xf32>
    %61 = arith.mulf %60, %57 : vector<2x1x1xf32>
    %62 = vector.extract_strided_slice %37 {offsets = [0, 3, 1], sizes = [2, 1, 1], strides = [1, 1, 1]} : vector<2x4x4xf32> to vector<2x1x1xf32>
    %63 = arith.mulf %49, %45 : vector<2x1x1xf32>
    %64 = arith.subf %62, %63 : vector<2x1x1xf32>
    %65 = arith.mulf %64, %57 : vector<2x1x1xf32>
    %66 = vector.extract_strided_slice %37 {offsets = [0, 2, 2], sizes = [2, 1, 1], strides = [1, 1, 1]} : vector<2x4x4xf32> to vector<2x1x1xf32>
    %67 = arith.mulf %47, %47 : vector<2x1x1xf32>
    %68 = arith.subf %66, %67 : vector<2x1x1xf32>
    %69 = arith.mulf %61, %61 : vector<2x1x1xf32>
    %70 = arith.subf %68, %69 : vector<2x1x1xf32>
    %cst_16 = arith.constant 1.000000e-30 : f32
    %71 = vector.broadcast %cst_16 : f32 to vector<2x1x1xf32>
    %72 = arith.maximumf %70, %71 : vector<2x1x1xf32>
    %73 = math.sqrt %72 : vector<2x1x1xf32>
    %cst_17 = arith.constant 1.000000e+00 : f32
    %74 = vector.broadcast %cst_17 : f32 to vector<2x1x1xf32>
    %75 = arith.divf %74, %73 : vector<2x1x1xf32>
    %76 = vector.extract_strided_slice %37 {offsets = [0, 3, 2], sizes = [2, 1, 1], strides = [1, 1, 1]} : vector<2x4x4xf32> to vector<2x1x1xf32>
    %77 = arith.mulf %49, %47 : vector<2x1x1xf32>
    %78 = arith.subf %76, %77 : vector<2x1x1xf32>
    %79 = arith.mulf %65, %61 : vector<2x1x1xf32>
    %80 = arith.subf %78, %79 : vector<2x1x1xf32>
    %81 = arith.mulf %80, %75 : vector<2x1x1xf32>
    %82 = vector.extract_strided_slice %37 {offsets = [0, 3, 3], sizes = [2, 1, 1], strides = [1, 1, 1]} : vector<2x4x4xf32> to vector<2x1x1xf32>
    %83 = arith.mulf %49, %49 : vector<2x1x1xf32>
    %84 = arith.subf %82, %83 : vector<2x1x1xf32>
    %85 = arith.mulf %65, %65 : vector<2x1x1xf32>
    %86 = arith.subf %84, %85 : vector<2x1x1xf32>
    %87 = arith.mulf %81, %81 : vector<2x1x1xf32>
    %88 = arith.subf %86, %87 : vector<2x1x1xf32>
    %cst_18 = arith.constant 1.000000e-30 : f32
    %89 = vector.broadcast %cst_18 : f32 to vector<2x1x1xf32>
    %90 = arith.maximumf %88, %89 : vector<2x1x1xf32>
    %91 = math.sqrt %90 : vector<2x1x1xf32>
    %cst_19 = arith.constant 1.000000e+00 : f32
    %92 = vector.broadcast %cst_19 : f32 to vector<2x1x1xf32>
    %93 = arith.divf %92, %91 : vector<2x1x1xf32>
    %94 = vector.extract_strided_slice %36 {offsets = [0, 0, 0], sizes = [2, 1, 16], strides = [1, 1, 1]} : vector<2x4x16xf32> to vector<2x1x16xf32>
    %95 = vector.broadcast %43 : vector<2x1x1xf32> to vector<2x1x16xf32>
    %96 = arith.mulf %94, %95 : vector<2x1x16xf32>
    %c0_20 = arith.constant 0 : index
    %c0_21 = arith.constant 0 : index
    %c0_22 = arith.constant 0 : index
    %97 = vector.load %arg4[%c0_20, %c0_21, %c0_22] : memref<2x4x16xf32, #tpu.memory_space<vmem>>, vector<2x1x16xf32>
    tpu.vector_store %arg4[%c0_20, %c0_21, %c0_22], %96 {strides = array<i32>} : memref<2x4x16xf32, #tpu.memory_space<vmem>>, vector<2x1x16xf32>,
    %98 = vector.extract_strided_slice %36 {offsets = [0, 1, 0], sizes = [2, 1, 16], strides = [1, 1, 1]} : vector<2x4x16xf32> to vector<2x1x16xf32>
    %99 = vector.broadcast %45 : vector<2x1x1xf32> to vector<2x1x16xf32>
    %100 = arith.mulf %99, %96 : vector<2x1x16xf32>
    %101 = arith.subf %98, %100 : vector<2x1x16xf32>
    %102 = vector.broadcast %57 : vector<2x1x1xf32> to vector<2x1x16xf32>
    %103 = arith.mulf %101, %102 : vector<2x1x16xf32>
    %c0_23 = arith.constant 0 : index
    %c1 = arith.constant 1 : index
    %c0_24 = arith.constant 0 : index
    %104 = vector.load %arg4[%c0_23, %c1, %c0_24] : memref<2x4x16xf32, #tpu.memory_space<vmem>>, vector<2x1x16xf32>
    tpu.vector_store %arg4[%c0_23, %c1, %c0_24], %103 {strides = array<i32>} : memref<2x4x16xf32, #tpu.memory_space<vmem>>, vector<2x1x16xf32>,
    %105 = vector.extract_strided_slice %36 {offsets = [0, 2, 0], sizes = [2, 1, 16], strides = [1, 1, 1]} : vector<2x4x16xf32> to vector<2x1x16xf32>
    %106 = vector.broadcast %47 : vector<2x1x1xf32> to vector<2x1x16xf32>
    %107 = arith.mulf %106, %96 : vector<2x1x16xf32>
    %108 = arith.subf %105, %107 : vector<2x1x16xf32>
    %109 = vector.broadcast %61 : vector<2x1x1xf32> to vector<2x1x16xf32>
    %110 = arith.mulf %109, %103 : vector<2x1x16xf32>
    %111 = arith.subf %108, %110 : vector<2x1x16xf32>
    %112 = vector.broadcast %75 : vector<2x1x1xf32> to vector<2x1x16xf32>
    %113 = arith.mulf %111, %112 : vector<2x1x16xf32>
    %c0_25 = arith.constant 0 : index
    %c2 = arith.constant 2 : index
    %c0_26 = arith.constant 0 : index
    %114 = vector.load %arg4[%c0_25, %c2, %c0_26] : memref<2x4x16xf32, #tpu.memory_space<vmem>>, vector<2x1x16xf32>
    tpu.vector_store %arg4[%c0_25, %c2, %c0_26], %113 {strides = array<i32>} : memref<2x4x16xf32, #tpu.memory_space<vmem>>, vector<2x1x16xf32>,
    %115 = vector.extract_strided_slice %36 {offsets = [0, 3, 0], sizes = [2, 1, 16], strides = [1, 1, 1]} : vector<2x4x16xf32> to vector<2x1x16xf32>
    %116 = vector.broadcast %49 : vector<2x1x1xf32> to vector<2x1x16xf32>
    %117 = arith.mulf %116, %96 : vector<2x1x16xf32>
    %118 = arith.subf %115, %117 : vector<2x1x16xf32>
    %119 = vector.broadcast %65 : vector<2x1x1xf32> to vector<2x1x16xf32>
    %120 = arith.mulf %119, %103 : vector<2x1x16xf32>
    %121 = arith.subf %118, %120 : vector<2x1x16xf32>
    %122 = vector.broadcast %81 : vector<2x1x1xf32> to vector<2x1x16xf32>
    %123 = arith.mulf %122, %113 : vector<2x1x16xf32>
    %124 = arith.subf %121, %123 : vector<2x1x16xf32>
    %125 = vector.broadcast %93 : vector<2x1x1xf32> to vector<2x1x16xf32>
    %126 = arith.mulf %124, %125 : vector<2x1x16xf32>
    %c0_27 = arith.constant 0 : index
    %c3 = arith.constant 3 : index
    %c0_28 = arith.constant 0 : index
    %127 = vector.load %arg4[%c0_27, %c3, %c0_28] : memref<2x4x16xf32, #tpu.memory_space<vmem>>, vector<2x1x16xf32>
    tpu.vector_store %arg4[%c0_27, %c3, %c0_28], %126 {strides = array<i32>} : memref<2x4x16xf32, #tpu.memory_space<vmem>>, vector<2x1x16xf32>,
    %c0_29 = arith.constant 0 : index
    %c0_30 = arith.constant 0 : index
    %c0_31 = arith.constant 0 : index
    %128 = vector.load %arg5[%c0_29, %c0_30, %c0_31] : memref<2x4x16xf32, #tpu.memory_space<vmem>>, vector<2x4x16xf32>
    tpu.vector_store %arg5[%c0_29, %c0_30, %c0_31], %33 {strides = array<i32>} : memref<2x4x16xf32, #tpu.memory_space<vmem>>, vector<2x4x16xf32>,
    return
  }
  func.func @transform_0(%arg0: i32) -> (i32, i32, i32) {
    %c0_i32 = arith.constant 0 : i32
    %c0_i32_0 = arith.constant 0 : i32
    %c0_i32_1 = arith.constant 0 : i32
    return %arg0, %c0_i32, %c0_i32_0 : i32, i32, i32
  }
  func.func @transform_1(%arg0: i32) -> (i32, i32, i32) {
    %c0_i32 = arith.constant 0 : i32
    %c0_i32_0 = arith.constant 0 : i32
    %c0_i32_1 = arith.constant 0 : i32
    return %arg0, %c0_i32, %c0_i32_0 : i32, i32, i32
  }
  func.func @transform_2(%arg0: i32) -> (i32, i32, i32) {
    %c0_i32 = arith.constant 0 : i32
    %c0_i32_0 = arith.constant 0 : i32
    %c0_i32_1 = arith.constant 0 : i32
    return %arg0, %c0_i32, %c0_i32_0 : i32, i32, i32
  }
  func.func @transform_3(%arg0: i32) -> (i32, i32, i32) {
    %c0_i32 = arith.constant 0 : i32
    %c0_i32_0 = arith.constant 0 : i32
    %c0_i32_1 = arith.constant 0 : i32
    return %arg0, %c0_i32, %c0_i32_0 : i32, i32, i32
  }
  func.func @transform_4(%arg0: i32) -> (i32, i32, i32) {
    %c0_i32 = arith.constant 0 : i32
    %c0_i32_0 = arith.constant 0 : i32
    %c0_i32_1 = arith.constant 0 : i32
    return %arg0, %c0_i32, %c0_i32_0 : i32, i32, i32
  }
}

</mosaic_0001>

<llo_original>
// kernel: tpu_custom_call.1
$region0: #{tpu_custom_call.1}
  #allocation0 [shape = 'u32[]', space=smem, size = 0x4, offset = 0x4, fixed_abs, tag = 'smem constant byte address 0x4 - core index']
  #allocation1 [shape = 'u32[144,128]{1,0:T(1,128)}', space=vmem, size = 0x12000, scoped, tag = 'internal scratch']
  %s0 = inlined_call_operand.hbm [shape: f32[2,4,16], index: 0, kind: input, shape index: {}]
  %s1 = inlined_call_operand.hbm [shape: f32[2,4,16], index: 1, kind: input, shape index: {}]
  %s2 = inlined_call_operand.hbm [shape: f32[2,4,16], index: 2, kind: input, shape index: {}]
  %s3 = inlined_call_operand.hbm [shape: f32[2,4,16], index: 3, kind: output, shape index: {0}]
  %s4 = inlined_call_operand.hbm [shape: f32[2,4,16], index: 4, kind: output, shape index: {1}]
  %5 = xla_tuple %s3, %s4
  %s6 = sld [smem:[#allocation0]]
  $region42: #{tpu_custom_call.1} parent=0
    _
  %s8 = ssub.s32 1, %s6
  %s9 = scalar_select 0, %s8, %s6
  $region1: #{tpu_custom_call.1} parent=0
    #allocation2 [shape = 'u8[4096]{0}', space=vmem, size = 0x1000, scoped, tag = 'input window, operand 0, single buffered']
    #allocation3 [shape = 's32[1]{0}', space=sflag, size = 0x4, scoped, tag = 'scoped memory for tpu_custom_call.1']
    #allocation4 [shape = 's32[1]{0}', space=sflag, size = 0x4, scoped, tag = 'scoped memory for tpu_custom_call.1']
    #allocation5 [shape = 'u8[4096]{0}', space=vmem, size = 0x1000, scoped, tag = 'input window, operand 1, single buffered']
    #allocation6 [shape = 's32[1]{0}', space=sflag, size = 0x4, scoped, tag = 'scoped memory for tpu_custom_call.1']
    #allocation7 [shape = 'u8[4096]{0}', space=vmem, size = 0x1000, scoped, tag = 'input window, operand 2, single buffered']
    #allocation8 [shape = 'u8[4096]{0}', space=vmem, size = 0x1000, scoped, tag = 'output window, operand 0, single buffered']
    #allocation9 [shape = 'u8[4096]{0}', space=vmem, size = 0x1000, scoped, tag = 'output window, operand 1, single buffered']
    #allocation10 [shape = 's32[1]{0}', space=sflag, size = 0x4, scoped, tag = 'scoped memory for tpu_custom_call.1']
    %10 = vsyncpa [#allocation3], 0
    %11 = vsyncpa [#allocation6], 0
    %12 = vsyncpa [#allocation4], 0
    %13 = vsyncpa [#allocation10], 0
    // Predicated region
    $region2: #{tpu_custom_call.1} parent=1 // pred_check
      _
    $region3: #{tpu_custom_call.1} parent=1 // pred_check_branch
      %15 = sbr.rel (0) target = $region5
    $region4: #{tpu_custom_call.1} parent=1 // pred_region
      %s17 = ssub.s32 128, 128
      %18 = vsyncadd [#allocation3], %s17
      %s19 = sshll.u32 [#allocation2], 4
      %s20 = int_to_ptr.vmem [resolvable:$true] %s19
      %25 = dma.hbm_to_vmem [thread:$0]  %s0, 128, %s20, [#allocation3], 64, 64, 4
    $region5: #{tpu_custom_call.1} parent=1 // pred_fallthru
      _
    // Predicated region
    $region6: #{tpu_custom_call.1} parent=1 // pred_check
      _
    $region7: #{tpu_custom_call.1} parent=1 // pred_check_branch
      %27 = sbr.rel (0) target = $region9
    $region8: #{tpu_custom_call.1} parent=1 // pred_region
      %s29 = ssub.s32 128, 128
      %30 = vsyncadd [#allocation6], %s29
      %s31 = sshll.u32 [#allocation5], 4
      %s32 = int_to_ptr.vmem [resolvable:$true] %s31
      %37 = dma.hbm_to_vmem [thread:$0]  %s1, 128, %s32, [#allocation6], 64, 64, 4
    $region9: #{tpu_custom_call.1} parent=1 // pred_fallthru
      _
    // Predicated region
    $region10: #{tpu_custom_call.1} parent=1 // pred_check
      _
    $region11: #{tpu_custom_call.1} parent=1 // pred_check_branch
      %39 = sbr.rel (0) target = $region13
    $region12: #{tpu_custom_call.1} parent=1 // pred_region
      %s41 = ssub.s32 128, 128
      %42 = vsyncadd [#allocation6], %s41
      %s43 = sshll.u32 [#allocation7], 4
      %s44 = int_to_ptr.vmem [resolvable:$true] %s43
      %49 = dma.hbm_to_vmem [thread:$0]  %s2, 128, %s44, [#allocation6], 64, 64, 4
    $region13: #{tpu_custom_call.1} parent=1 // pred_fallthru
      _
    // Predicated region
    $region14: #{tpu_custom_call.1} parent=1 // pred_check
      _
    $region15: #{tpu_custom_call.1} parent=1 // pred_check_branch
      %51 = sbr.rel (0) target = $region17
    $region16: #{tpu_custom_call.1} parent=1 // pred_region
      %52 = dma.done [#allocation3], 128
    $region17: #{tpu_custom_call.1} parent=1 // pred_fallthru
      _
    // Predicated region
    $region18: #{tpu_custom_call.1} parent=1 // pred_check
      _
    $region19: #{tpu_custom_call.1} parent=1 // pred_check_branch
      %54 = sbr.rel (0) target = $region21
    $region20: #{tpu_custom_call.1} parent=1 // pred_region
      %55 = dma.done [#allocation6], 128
    $region21: #{tpu_custom_call.1} parent=1 // pred_fallthru
      _
    // Predicated region
    $region22: #{tpu_custom_call.1} parent=1 // pred_check
      _
    $region23: #{tpu_custom_call.1} parent=1 // pred_check_branch
      %57 = sbr.rel (0) target = $region25
    $region24: #{tpu_custom_call.1} parent=1 // pred_region
      %58 = dma.done [#allocation6], 128
    $region25: #{tpu_custom_call.1} parent=1 // pred_fallthru
      _
    %v59 = vld [vmem:[#allocation2] sm:$0xf]
    %v60 = vld [vmem:[#allocation2 + $0x4] sm:$0xf]
    %v61 = vld [vmem:[#allocation5] sm:$0xf]
    %v62 = vld [vmem:[#allocation5 + $0x4] sm:$0xf]
    %v63 = vld [vmem:[#allocation7] sm:$0xf]
    %v64 = vld [vmem:[#allocation7 + $0x4] sm:$0xf]
    %vm65 = vcmask 130048
    %v67 = vsel %vm65, %v59, 0
    %v70 = vsel %vm65, %v61, 0
    %72 = vmatprep.subr.mxu0 0.0
    %73 = vmatpush1.xpose.msra.mxu0 %v70
    %74 = vmatprep.subr.mxu0 0.0
    %75 = vmatpush1.xpose.msra.mxu0 0.0
    %76 = vmatprep.subr.mxu0 0.0
    %77 = vmatpush1.xpose.msra.mxu0 0.0
    %78 = vmatprep.subr.mxu0 0.0
    %79 = vmatpush1.xpose.msra.mxu0 0.0
    %80 = vmatprep.subr.mxu0 0.0
    %81 = vmatpush1.xpose.msra.mxu0 0.0
    %82 = vmatprep.subr.mxu0 0.0
    %83 = vmatpush1.xpose.msra.mxu0 0.0
    %84 = vmatprep.subr.mxu0 0.0
    %85 = vmatpush1.xpose.msra.mxu0 0.0
    %86 = vmatprep.subr.mxu0 0.0
    %87 = vmatpush1.xpose.msra.mxu0 0.0
    %88 = vmatprep.subr.mxu0 0.0
    %89 = vmatpush1.xpose.msra.mxu0 0.0
    %90 = vmatprep.subr.mxu0 0.0
    %91 = vmatpush1.xpose.msra.mxu0 0.0
    %92 = vmatprep.subr.mxu0 0.0
    %93 = vmatpush1.xpose.msra.mxu0 0.0
    %94 = vmatprep.subr.mxu0 0.0
    %95 = vmatpush1.xpose.msra.mxu0 0.0
    %96 = vmatprep.subr.mxu0 0.0
    %97 = vmatpush1.xpose.msra.mxu0 0.0
    %98 = vmatprep.subr.mxu0 0.0
    %99 = vmatpush1.xpose.msra.mxu0 0.0
    %100 = vmatprep.subr.mxu0 0.0
    %101 = vmatpush1.xpose.msra.mxu0 0.0
    %102 = vmatprep.subr.mxu0 0.0
    %103 = vmatpush1.xpose.msra.mxu0 0.0
    %104 = vmatprep.subr.mxu0 0.0
    %105 = vmatpush1.xpose.msra.mxu0 0.0
    %106 = vmatprep.subr.mxu0 0.0
    %107 = vmatpush1.xpose.msra.mxu0 0.0
    %108 = vmatprep.subr.mxu0 0.0
    %109 = vmatpush1.xpose.msra.mxu0 0.0
    %110 = vmatprep.subr.mxu0 0.0
    %111 = vmatpush1.xpose.msra.mxu0 0.0
    %112 = vmatprep.subr.mxu0 0.0
    %113 = vmatpush1.xpose.msra.mxu0 0.0
    %114 = vmatprep.subr.mxu0 0.0
    %115 = vmatpush1.xpose.msra.mxu0 0.0
    %116 = vmatprep.subr.mxu0 0.0
    %117 = vmatpush1.xpose.msra.mxu0 0.0
    %118 = vmatprep.subr.mxu0 0.0
    %119 = vmatpush1.xpose.msra.mxu0 0.0
    %120 = vmatprep.subr.mxu0 0.0
    %121 = vmatpush1.xpose.msra.mxu0 0.0
    %122 = vmatprep.subr.mxu0 0.0
    %123 = vmatpush1.xpose.msra.mxu0 0.0
    %124 = vmatprep.subr.mxu0 0.0
    %125 = vmatpush1.xpose.msra.mxu0 0.0
    %126 = vmatprep.subr.mxu0 0.0
    %127 = vmatpush1.xpose.msra.mxu0 0.0
    %128 = vmatprep.subr.mxu0 0.0
    %129 = vmatpush1.xpose.msra.mxu0 0.0
    %130 = vmatprep.subr.mxu0 0.0
    %131 = vmatpush1.xpose.msra.mxu0 0.0
    %132 = vmatprep.subr.mxu0 0.0
    %133 = vmatpush1.xpose.msra.mxu0 0.0
    %134 = vmatprep.subr.mxu0 0.0
    %135 = vmatpush1.xpose.msra.mxu0 0.0
    %136 = vmatprep.mubr.f32.mxu0 0.0
    %137 = vmatmul.mubr.f32.gmra.mrb[0].mxu0 %v67
    %v138 = vpop.f32.mrb[0].mxu0
    %v139 = vadd.f32 0.0, %v138
    %v140 = vpop.f32.mrb[0].mxu0
    %141 = vdwg.mxu0
    %v143 = vsel %vm65, %v60, 0
    %v146 = vsel %vm65, %v62, 0
    %148 = vmatprep.subr.mxu0 0.0
    %149 = vmatpush1.xpose.msra.mxu0 %v146
    %150 = vmatprep.subr.mxu0 0.0
    %151 = vmatpush1.xpose.msra.mxu0 0.0
    %152 = vmatprep.subr.mxu0 0.0
    %153 = vmatpush1.xpose.msra.mxu0 0.0
    %154 = vmatprep.subr.mxu0 0.0
    %155 = vmatpush1.xpose.msra.mxu0 0.0
    %156 = vmatprep.subr.mxu0 0.0
    %157 = vmatpush1.xpose.msra.mxu0 0.0
    %158 = vmatprep.subr.mxu0 0.0
    %159 = vmatpush1.xpose.msra.mxu0 0.0
    %160 = vmatprep.subr.mxu0 0.0
    %161 = vmatpush1.xpose.msra.mxu0 0.0
    %162 = vmatprep.subr.mxu0 0.0
    %163 = vmatpush1.xpose.msra.mxu0 0.0
    %164 = vmatprep.subr.mxu0 0.0
    %165 = vmatpush1.xpose.msra.mxu0 0.0
    %166 = vmatprep.subr.mxu0 0.0
    %167 = vmatpush1.xpose.msra.mxu0 0.0
    %168 = vmatprep.subr.mxu0 0.0
    %169 = vmatpush1.xpose.msra.mxu0 0.0
    %170 = vmatprep.subr.mxu0 0.0
    %171 = vmatpush1.xpose.msra.mxu0 0.0
    %172 = vmatprep.subr.mxu0 0.0
    %173 = vmatpush1.xpose.msra.mxu0 0.0
    %174 = vmatprep.subr.mxu0 0.0
    %175 = vmatpush1.xpose.msra.mxu0 0.0
    %176 = vmatprep.subr.mxu0 0.0
    %177 = vmatpush1.xpose.msra.mxu0 0.0
    %178 = vmatprep.subr.mxu0 0.0
    %179 = vmatpush1.xpose.msra.mxu0 0.0
    %180 = vmatprep.subr.mxu0 0.0
    %181 = vmatpush1.xpose.msra.mxu0 0.0
    %182 = vmatprep.subr.mxu0 0.0
    %183 = vmatpush1.xpose.msra.mxu0 0.0
    %184 = vmatprep.subr.mxu0 0.0
    %185 = vmatpush1.xpose.msra.mxu0 0.0
    %186 = vmatprep.subr.mxu0 0.0
    %187 = vmatpush1.xpose.msra.mxu0 0.0
    %188 = vmatprep.subr.mxu0 0.0
    %189 = vmatpush1.xpose.msra.mxu0 0.0
    %190 = vmatprep.subr.mxu0 0.0
    %191 = vmatpush1.xpose.msra.mxu0 0.0
    %192 = vmatprep.subr.mxu0 0.0
    %193 = vmatpush1.xpose.msra.mxu0 0.0
    %194 = vmatprep.subr.mxu0 0.0
    %195 = vmatpush1.xpose.msra.mxu0 0.0
    %196 = vmatprep.subr.mxu0 0.0
    %197 = vmatpush1.xpose.msra.mxu0 0.0
    %198 = vmatprep.subr.mxu0 0.0
    %199 = vmatpush1.xpose.msra.mxu0 0.0
    %200 = vmatprep.subr.mxu0 0.0
    %201 = vmatpush1.xpose.msra.mxu0 0.0
    %202 = vmatprep.subr.mxu0 0.0
    %203 = vmatpush1.xpose.msra.mxu0 0.0
    %204 = vmatprep.subr.mxu0 0.0
    %205 = vmatpush1.xpose.msra.mxu0 0.0
    %206 = vmatprep.subr.mxu0 0.0
    %207 = vmatpush1.xpose.msra.mxu0 0.0
    %208 = vmatprep.subr.mxu0 0.0
    %209 = vmatpush1.xpose.msra.mxu0 0.0
    %210 = vmatprep.subr.mxu0 0.0
    %211 = vmatpush1.xpose.msra.mxu0 0.0
    %212 = vmatprep.mubr.f32.mxu0 0.0
    %213 = vmatmul.mubr.f32.gmra.mrb[0].mxu0 %v143
    %v214 = vpop.f32.mrb[0].mxu0
    %v215 = vadd.f32 0.0, %v214
    %v216 = vpop.f32.mrb[0].mxu0
    %217 = vdwg.mxu0
    %219 = vset.pattern.permute.xlu0 0
    %220 = vperm.xlu0 %219, %v139
    %v221 = vpop.permute.xlu0 %220
    %224 = vset.pattern.permute.xlu0 0
    %225 = vperm.xlu0 %224, %v215
    %v226 = vpop.permute.xlu0 %225
    %v228 = vlaneseq
    %v229 = vshrl.u32 %v228, 7
    %v230 = vsub.s32 0, %v229
    %v231 = vrot.slane %v61, %v230
    %v232 = vlaneseq
    %v233 = vshrl.u32 %v232, 7
    %v234 = vsub.s32 0, %v233
    %v235 = vrot.slane %v62, %v234
    %v236 = vmul.f32 %v221, %v231
    %v237 = vmul.f32 %v226, %v235
    %238 = vset.pattern.permute.xlu0 1
    %239 = vperm.xlu0 %238, %v139
    %v240 = vpop.permute.xlu0 %239
    %242 = vset.pattern.permute.xlu0 1
    %243 = vperm.xlu0 %242, %v215
    %v244 = vpop.permute.xlu0 %243
    %v246 = vlaneseq
    %v247 = vshrl.u32 %v246, 7
    %v248 = vsub.s32 1, %v247
    %v249 = vrot.slane %v61, %v248
    %v250 = vlaneseq
    %v251 = vshrl.u32 %v250, 7
    %v252 = vsub.s32 1, %v251
    %v253 = vrot.slane %v62, %v252
    %v254 = vmul.f32 %v240, %v249
    %v255 = vmul.f32 %v244, %v253
    %v256 = vadd.f32 %v236, %v254
    %v257 = vadd.f32 %v237, %v255
    %258 = vset.pattern.permute.xlu0 2
    %259 = vperm.xlu0 %258, %v139
    %v260 = vpop.permute.xlu0 %259
    %262 = vset.pattern.permute.xlu0 2
    %263 = vperm.xlu0 %262, %v215
    %v264 = vpop.permute.xlu0 %263
    %v266 = vlaneseq
    %v267 = vshrl.u32 %v266, 7
    %v268 = vsub.s32 2, %v267
    %v269 = vrot.slane %v61, %v268
    %v270 = vlaneseq
    %v271 = vshrl.u32 %v270, 7
    %v272 = vsub.s32 2, %v271
    %v273 = vrot.slane %v62, %v272
    %v274 = vmul.f32 %v260, %v269
    %v275 = vmul.f32 %v264, %v273
    %v276 = vadd.f32 %v256, %v274
    %v277 = vadd.f32 %v257, %v275
    %278 = vset.pattern.permute.xlu0 3
    %279 = vperm.xlu0 %278, %v139
    %v280 = vpop.permute.xlu0 %279
    %282 = vset.pattern.permute.xlu0 3
    %283 = vperm.xlu0 %282, %v215
    %v284 = vpop.permute.xlu0 %283
    %v286 = vlaneseq
    %v287 = vshrl.u32 %v286, 7
    %v288 = vsub.s32 3, %v287
    %v289 = vrot.slane %v61, %v288
    %v290 = vlaneseq
    %v291 = vshrl.u32 %v290, 7
    %v292 = vsub.s32 3, %v291
    %v293 = vrot.slane %v62, %v292
    %v294 = vmul.f32 %v280, %v289
    %v295 = vmul.f32 %v284, %v293
    %v296 = vadd.f32 %v276, %v294
    %v297 = vadd.f32 %v277, %v295
    %v298 = vsub.f32 %v63, %v296
    %v299 = vsub.f32 %v64, %v297
    %v300 = vmul.f32 %v298, 0.1
    %v301 = vmul.f32 %v299, 0.1
    %v302 = vsub.f32 %v59, %v296
    %v303 = vsub.f32 %v60, %v297
    %v304 = vmul.f32 %v302, 0.01
    %v305 = vmul.f32 %v303, 0.01
    %v306 = vadd.f32 %v300, %v304
    %v307 = vadd.f32 %v301, %v305
    %v308 = vmul.f32 %v306, 0.01
    %v309 = vmul.f32 %v307, 0.01
    %v310 = vsub.f32 %v61, %v308
    %v311 = vsub.f32 %v62, %v309
    %v313 = vsel %vm65, %v310, 0
    %315 = vmatprep.subr.mxu0 0.0
    %316 = vmatpush1.xpose.msra.mxu0 %v313
    %317 = vmatprep.subr.mxu0 0.0
    %318 = vmatpush1.xpose.msra.mxu0 0.0
    %319 = vmatprep.subr.mxu0 0.0
    %320 = vmatpush1.xpose.msra.mxu0 0.0
    %321 = vmatprep.subr.mxu0 0.0
    %322 = vmatpush1.xpose.msra.mxu0 0.0
    %323 = vmatprep.subr.mxu0 0.0
    %324 = vmatpush1.xpose.msra.mxu0 0.0
    %325 = vmatprep.subr.mxu0 0.0
    %326 = vmatpush1.xpose.msra.mxu0 0.0
    %327 = vmatprep.subr.mxu0 0.0
    %328 = vmatpush1.xpose.msra.mxu0 0.0
    %329 = vmatprep.subr.mxu0 0.0
    %330 = vmatpush1.xpose.msra.mxu0 0.0
    %331 = vmatprep.subr.mxu0 0.0
    %332 = vmatpush1.xpose.msra.mxu0 0.0
    %333 = vmatprep.subr.mxu0 0.0
    %334 = vmatpush1.xpose.msra.mxu0 0.0
    %335 = vmatprep.subr.mxu0 0.0
    %336 = vmatpush1.xpose.msra.mxu0 0.0
    %337 = vmatprep.subr.mxu0 0.0
    %338 = vmatpush1.xpose.msra.mxu0 0.0
    %339 = vmatprep.subr.mxu0 0.0
    %340 = vmatpush1.xpose.msra.mxu0 0.0
    %341 = vmatprep.subr.mxu0 0.0
    %342 = vmatpush1.xpose.msra.mxu0 0.0
    %343 = vmatprep.subr.mxu0 0.0
    %344 = vmatpush1.xpose.msra.mxu0 0.0
    %345 = vmatprep.subr.mxu0 0.0
    %346 = vmatpush1.xpose.msra.mxu0 0.0
    %347 = vmatprep.subr.mxu0 0.0
    %348 = vmatpush1.xpose.msra.mxu0 0.0
    %349 = vmatprep.subr.mxu0 0.0
    %350 = vmatpush1.xpose.msra.mxu0 0.0
    %351 = vmatprep.subr.mxu0 0.0
    %352 = vmatpush1.xpose.msra.mxu0 0.0
    %353 = vmatprep.subr.mxu0 0.0
    %354 = vmatpush1.xpose.msra.mxu0 0.0
    %355 = vmatprep.subr.mxu0 0.0
    %356 = vmatpush1.xpose.msra.mxu0 0.0
    %357 = vmatprep.subr.mxu0 0.0
    %358 = vmatpush1.xpose.msra.mxu0 0.0
    %359 = vmatprep.subr.mxu0 0.0
    %360 = vmatpush1.xpose.msra.mxu0 0.0
    %361 = vmatprep.subr.mxu0 0.0
    %362 = vmatpush1.xpose.msra.mxu0 0.0
    %363 = vmatprep.subr.mxu0 0.0
    %364 = vmatpush1.xpose.msra.mxu0 0.0
    %365 = vmatprep.subr.mxu0 0.0
    %366 = vmatpush1.xpose.msra.mxu0 0.0
    %367 = vmatprep.subr.mxu0 0.0
    %368 = vmatpush1.xpose.msra.mxu0 0.0
    %369 = vmatprep.subr.mxu0 0.0
    %370 = vmatpush1.xpose.msra.mxu0 0.0
    %371 = vmatprep.subr.mxu0 0.0
    %372 = vmatpush1.xpose.msra.mxu0 0.0
    %373 = vmatprep.subr.mxu0 0.0
    %374 = vmatpush1.xpose.msra.mxu0 0.0
    %375 = vmatprep.subr.mxu0 0.0
    %376 = vmatpush1.xpose.msra.mxu0 0.0
    %377 = vmatprep.subr.mxu0 0.0
    %378 = vmatpush1.xpose.msra.mxu0 0.0
    %379 = vmatprep.mubr.f32.mxu0 0.0
    %380 = vmatmul.mubr.f32.gmra.mrb[0].mxu0 %v313
    %v381 = vpop.f32.mrb[0].mxu0
    %v382 = vadd.f32 0.0, %v381
    %v383 = vpop.f32.mrb[0].mxu0
    %384 = vdwg.mxu0
    %v386 = vsel %vm65, %v311, 0
    %388 = vmatprep.subr.mxu0 0.0
    %389 = vmatpush1.xpose.msra.mxu0 %v386
    %390 = vmatprep.subr.mxu0 0.0
    %391 = vmatpush1.xpose.msra.mxu0 0.0
    %392 = vmatprep.subr.mxu0 0.0
    %393 = vmatpush1.xpose.msra.mxu0 0.0
    %394 = vmatprep.subr.mxu0 0.0
    %395 = vmatpush1.xpose.msra.mxu0 0.0
    %396 = vmatprep.subr.mxu0 0.0
    %397 = vmatpush1.xpose.msra.mxu0 0.0
    %398 = vmatprep.subr.mxu0 0.0
    %399 = vmatpush1.xpose.msra.mxu0 0.0
    %400 = vmatprep.subr.mxu0 0.0
    %401 = vmatpush1.xpose.msra.mxu0 0.0
    %402 = vmatprep.subr.mxu0 0.0
    %403 = vmatpush1.xpose.msra.mxu0 0.0
    %404 = vmatprep.subr.mxu0 0.0
    %405 = vmatpush1.xpose.msra.mxu0 0.0
    %406 = vmatprep.subr.mxu0 0.0
    %407 = vmatpush1.xpose.msra.mxu0 0.0
    %408 = vmatprep.subr.mxu0 0.0
    %409 = vmatpush1.xpose.msra.mxu0 0.0
    %410 = vmatprep.subr.mxu0 0.0
    %411 = vmatpush1.xpose.msra.mxu0 0.0
    %412 = vmatprep.subr.mxu0 0.0
    %413 = vmatpush1.xpose.msra.mxu0 0.0
    %414 = vmatprep.subr.mxu0 0.0
    %415 = vmatpush1.xpose.msra.mxu0 0.0
    %416 = vmatprep.subr.mxu0 0.0
    %417 = vmatpush1.xpose.msra.mxu0 0.0
    %418 = vmatprep.subr.mxu0 0.0
    %419 = vmatpush1.xpose.msra.mxu0 0.0
    %420 = vmatprep.subr.mxu0 0.0
    %421 = vmatpush1.xpose.msra.mxu0 0.0
    %422 = vmatprep.subr.mxu0 0.0
    %423 = vmatpush1.xpose.msra.mxu0 0.0
    %424 = vmatprep.subr.mxu0 0.0
    %425 = vmatpush1.xpose.msra.mxu0 0.0
    %426 = vmatprep.subr.mxu0 0.0
    %427 = vmatpush1.xpose.msra.mxu0 0.0
    %428 = vmatprep.subr.mxu0 0.0
    %429 = vmatpush1.xpose.msra.mxu0 0.0
    %430 = vmatprep.subr.mxu0 0.0
    %431 = vmatpush1.xpose.msra.mxu0 0.0
    %432 = vmatprep.subr.mxu0 0.0
    %433 = vmatpush1.xpose.msra.mxu0 0.0
    %434 = vmatprep.subr.mxu0 0.0
    %435 = vmatpush1.xpose.msra.mxu0 0.0
    %436 = vmatprep.subr.mxu0 0.0
    %437 = vmatpush1.xpose.msra.mxu0 0.0
    %438 = vmatprep.subr.mxu0 0.0
    %439 = vmatpush1.xpose.msra.mxu0 0.0
    %440 = vmatprep.subr.mxu0 0.0
    %441 = vmatpush1.xpose.msra.mxu0 0.0
    %442 = vmatprep.subr.mxu0 0.0
    %443 = vmatpush1.xpose.msra.mxu0 0.0
    %444 = vmatprep.subr.mxu0 0.0
    %445 = vmatpush1.xpose.msra.mxu0 0.0
    %446 = vmatprep.subr.mxu0 0.0
    %447 = vmatpush1.xpose.msra.mxu0 0.0
    %448 = vmatprep.subr.mxu0 0.0
    %449 = vmatpush1.xpose.msra.mxu0 0.0
    %450 = vmatprep.subr.mxu0 0.0
    %451 = vmatpush1.xpose.msra.mxu0 0.0
    %452 = vmatprep.mubr.f32.mxu0 0.0
    %453 = vmatmul.mubr.f32.gmra.mrb[0].mxu0 %v386
    %v454 = vpop.f32.mrb[0].mxu0
    %v455 = vadd.f32 0.0, %v454
    %v456 = vpop.f32.mrb[0].mxu0
    %457 = vdwg.mxu0
    %v458 = vmax.f32 %v382, 1e-30
    %v459 = vmax.f32 %v455, 1e-30
    %v460 = vrsqrt.pop %v458
    %v461 = vmul.f32 %v458, %v460
    %vm462 = vcmp.eq.f32.partialorder %v458, inf
    %v463 = vsel %vm462, %v458, %v461
    %vm464 = vcmp.eq.f32.partialorder %v458, 0.0
    %v465 = vand.u32 %v458, 2147483648
    %v466 = vsel %vm464, %v465, %v463
    %v467 = vrsqrt.pop %v459
    %v468 = vmul.f32 %v459, %v467
    %vm469 = vcmp.eq.f32.partialorder %v459, inf
    %v470 = vsel %vm469, %v459, %v468
    %vm471 = vcmp.eq.f32.partialorder %v459, 0.0
    %v472 = vand.u32 %v459, 2147483648
    %v473 = vsel %vm471, %v472, %v470
    %v474 = vrcp.pop %v466
    %v475 = vmul.f32 1.0, %v474
    %v476 = vrcp.pop %v473
    %v477 = vmul.f32 1.0, %v476
    %v480 = vrot.slane %v475, 7
    %v481 = vrot.slane %v477, 7
    %v484 = vmul.f32 %v382, %v480
    %v485 = vmul.f32 %v455, %v481
    %v486 = vrot.slane %v475, 6
    %v487 = vrot.slane %v477, 6
    %v490 = vmul.f32 %v382, %v486
    %v491 = vmul.f32 %v455, %v487
    %v492 = vrot.slane %v475, 5
    %v493 = vrot.slane %v477, 5
    %v496 = vmul.f32 %v382, %v492
    %v497 = vmul.f32 %v455, %v493
    %v498 = vmul.f32 %v484, %v484
    %v499 = vmul.f32 %v485, %v485
    %502 = vrot.lane.b32.xlu0 %v498, 1
    %v503 = vpop.permute.xlu0 %502
    %504 = vrot.lane.b32.xlu0 %v499, 1
    %v505 = vpop.permute.xlu0 %504
    %v508 = vsub.f32 %v382, %v503
    %v509 = vsub.f32 %v455, %v505
    %v510 = vmax.f32 %v508, 1e-30
    %v511 = vmax.f32 %v509, 1e-30
    %v512 = vrsqrt.pop %v510
    %v513 = vmul.f32 %v510, %v512
    %vm514 = vcmp.eq.f32.partialorder %v510, inf
    %v515 = vsel %vm514, %v510, %v513
    %vm516 = vcmp.eq.f32.partialorder %v510, 0.0
    %v517 = vand.u32 %v510, 2147483648
    %v518 = vsel %vm516, %v517, %v515
    %v519 = vrsqrt.pop %v511
    %v520 = vmul.f32 %v511, %v519
    %vm521 = vcmp.eq.f32.partialorder %v511, inf
    %v522 = vsel %vm521, %v511, %v520
    %vm523 = vcmp.eq.f32.partialorder %v511, 0.0
    %v524 = vand.u32 %v511, 2147483648
    %v525 = vsel %vm523, %v524, %v522
    %v526 = vrcp.pop %v518
    %v527 = vmul.f32 1.0, %v526
    %v528 = vrcp.pop %v525
    %v529 = vmul.f32 1.0, %v528
    %v532 = vrot.slane %v484, 7
    %v533 = vrot.slane %v485, 7
    %v536 = vmul.f32 %v490, %v532
    %v537 = vmul.f32 %v491, %v533
    %540 = vrot.lane.b32.xlu0 %v536, 1
    %v541 = vpop.permute.xlu0 %540
    %542 = vrot.lane.b32.xlu0 %v537, 1
    %v543 = vpop.permute.xlu0 %542
    %v546 = vsub.f32 %v382, %v541
    %v547 = vsub.f32 %v455, %v543
    %v550 = vrot.slane %v527, 7
    %v551 = vrot.slane %v529, 7
    %v554 = vmul.f32 %v546, %v550
    %v555 = vmul.f32 %v547, %v551
    %v556 = vrot.slane %v484, 6
    %v557 = vrot.slane %v485, 6
    %v560 = vmul.f32 %v496, %v556
    %v561 = vmul.f32 %v497, %v557
    %564 = vrot.lane.b32.xlu0 %v560, 1
    %v565 = vpop.permute.xlu0 %564
    %566 = vrot.lane.b32.xlu0 %v561, 1
    %v567 = vpop.permute.xlu0 %566
    %v570 = vsub.f32 %v382, %v565
    %v571 = vsub.f32 %v455, %v567
    %v572 = vrot.slane %v527, 6
    %v573 = vrot.slane %v529, 6
    %v576 = vmul.f32 %v570, %v572
    %v577 = vmul.f32 %v571, %v573
    %v578 = vmul.f32 %v490, %v490
    %v579 = vmul.f32 %v491, %v491
    %582 = vrot.lane.b32.xlu0 %v578, 2
    %v583 = vpop.permute.xlu0 %582
    %584 = vrot.lane.b32.xlu0 %v579, 2
    %v585 = vpop.permute.xlu0 %584
    %v588 = vsub.f32 %v382, %v583
    %v589 = vsub.f32 %v455, %v585
    %v590 = vmul.f32 %v554, %v554
    %v591 = vmul.f32 %v555, %v555
    %594 = vrot.lane.b32.xlu0 %v590, 1
    %v595 = vpop.permute.xlu0 %594
    %596 = vrot.lane.b32.xlu0 %v591, 1
    %v597 = vpop.permute.xlu0 %596
    %v600 = vsub.f32 %v588, %v595
    %v601 = vsub.f32 %v589, %v597
    %v602 = vmax.f32 %v600, 1e-30
    %v603 = vmax.f32 %v601, 1e-30
    %v604 = vrsqrt.pop %v602
    %v605 = vmul.f32 %v602, %v604
    %vm606 = vcmp.eq.f32.partialorder %v602, inf
    %v607 = vsel %vm606, %v602, %v605
    %vm608 = vcmp.eq.f32.partialorder %v602, 0.0
    %v609 = vand.u32 %v602, 2147483648
    %v610 = vsel %vm608, %v609, %v607
    %v611 = vrsqrt.pop %v603
    %v612 = vmul.f32 %v603, %v611
    %vm613 = vcmp.eq.f32.partialorder %v603, inf
    %v614 = vsel %vm613, %v603, %v612
    %vm615 = vcmp.eq.f32.partialorder %v603, 0.0
    %v616 = vand.u32 %v603, 2147483648
    %v617 = vsel %vm615, %v616, %v614
    %v618 = vrcp.pop %v610
    %v619 = vmul.f32 1.0, %v618
    %v620 = vrcp.pop %v617
    %v621 = vmul.f32 1.0, %v620
    %v624 = vrot.slane %v490, 7
    %v625 = vrot.slane %v491, 7
    %v628 = vmul.f32 %v496, %v624
    %v629 = vmul.f32 %v497, %v625
    %632 = vrot.lane.b32.xlu0 %v628, 2
    %v633 = vpop.permute.xlu0 %632
    %634 = vrot.lane.b32.xlu0 %v629, 2
    %v635 = vpop.permute.xlu0 %634
    %v638 = vsub.f32 %v382, %v633
    %v639 = vsub.f32 %v455, %v635
    %v642 = vrot.slane %v554, 7
    %v643 = vrot.slane %v555, 7
    %v646 = vmul.f32 %v576, %v642
    %v647 = vmul.f32 %v577, %v643
    %650 = vrot.lane.b32.xlu0 %v646, 1
    %v651 = vpop.permute.xlu0 %650
    %652 = vrot.lane.b32.xlu0 %v647, 1
    %v653 = vpop.permute.xlu0 %652
    %v656 = vsub.f32 %v638, %v651
    %v657 = vsub.f32 %v639, %v653
    %v660 = vrot.slane %v619, 7
    %v661 = vrot.slane %v621, 7
    %v664 = vmul.f32 %v656, %v660
    %v665 = vmul.f32 %v657, %v661
    %v666 = vmul.f32 %v496, %v496
    %v667 = vmul.f32 %v497, %v497
    %670 = vrot.lane.b32.xlu0 %v666, 3
    %v671 = vpop.permute.xlu0 %670
    %672 = vrot.lane.b32.xlu0 %v667, 3
    %v673 = vpop.permute.xlu0 %672
    %v676 = vsub.f32 %v382, %v671
    %v677 = vsub.f32 %v455, %v673
    %v678 = vmul.f32 %v576, %v576
    %v679 = vmul.f32 %v577, %v577
    %682 = vrot.lane.b32.xlu0 %v678, 2
    %v683 = vpop.permute.xlu0 %682
    %684 = vrot.lane.b32.xlu0 %v679, 2
    %v685 = vpop.permute.xlu0 %684
    %v688 = vsub.f32 %v676, %v683
    %v689 = vsub.f32 %v677, %v685
    %v690 = vmul.f32 %v664, %v664
    %v691 = vmul.f32 %v665, %v665
    %694 = vrot.lane.b32.xlu0 %v690, 1
    %v695 = vpop.permute.xlu0 %694
    %696 = vrot.lane.b32.xlu0 %v691, 1
    %v697 = vpop.permute.xlu0 %696
    %v700 = vsub.f32 %v688, %v695
    %v701 = vsub.f32 %v689, %v697
    %v702 = vmax.f32 %v700, 1e-30
    %v703 = vmax.f32 %v701, 1e-30
    %v704 = vrsqrt.pop %v702
    %v705 = vmul.f32 %v702, %v704
    %vm706 = vcmp.eq.f32.partialorder %v702, inf
    %v707 = vsel %vm706, %v702, %v705
    %vm708 = vcmp.eq.f32.partialorder %v702, 0.0
    %v709 = vand.u32 %v702, 2147483648
    %v710 = vsel %vm708, %v709, %v707
    %v711 = vrsqrt.pop %v703
    %v712 = vmul.f32 %v703, %v711
    %vm713 = vcmp.eq.f32.partialorder %v703, inf
    %v714 = vsel %vm713, %v703, %v712
    %vm715 = vcmp.eq.f32.partialorder %v703, 0.0
    %v716 = vand.u32 %v703, 2147483648
    %v717 = vsel %vm715, %v716, %v714
    %v718 = vrcp.pop %v710
    %v719 = vmul.f32 1.0, %v718
    %v720 = vrcp.pop %v717
    %v721 = vmul.f32 1.0, %v720
    %722 = vset.pattern.permute.xlu0 0
    %723 = vperm.xlu0 %722, %v475
    %v724 = vpop.permute.xlu0 %723
    %726 = vset.pattern.permute.xlu0 0
    %727 = vperm.xlu0 %726, %v477
    %v728 = vpop.permute.xlu0 %727
    %v730 = vmul.f32 %v310, %v724
    %v731 = vmul.f32 %v311, %v728
    %vm732 = vcmask 122880
    %733 = vst.msk [vmem:[#allocation8] sm:$0x1] %vm732, %v730
    %734 = vst.msk [vmem:[#allocation8 + $0x4] sm:$0x1] %vm732, %v731
    %735 = vset.pattern.permute.xlu0 0
    %736 = vperm.xlu0 %735, %v484
    %v737 = vpop.permute.xlu0 %736
    %739 = vset.pattern.permute.xlu0 0
    %740 = vperm.xlu0 %739, %v485
    %v741 = vpop.permute.xlu0 %740
    %v745 = vrot.slane %v730, 7
    %v746 = vrot.slane %v731, 7
    %v749 = vmul.f32 %v737, %v745
    %v750 = vmul.f32 %v741, %v746
    %v751 = vsub.f32 %v310, %v749
    %v752 = vsub.f32 %v311, %v750
    %753 = vset.pattern.permute.xlu0 1
    %754 = vperm.xlu0 %753, %v527
    %v755 = vpop.permute.xlu0 %754
    %757 = vset.pattern.permute.xlu0 1
    %758 = vperm.xlu0 %757, %v529
    %v759 = vpop.permute.xlu0 %758
    %v761 = vmul.f32 %v751, %v755
    %v762 = vmul.f32 %v752, %v759
    %vm763 = vcmask 123905
    %764 = vst.msk [vmem:[#allocation8] sm:$0x2] %vm763, %v761
    %765 = vst.msk [vmem:[#allocation8 + $0x4] sm:$0x2] %vm763, %v762
    %766 = vset.pattern.permute.xlu0 0
    %767 = vperm.xlu0 %766, %v490
    %v768 = vpop.permute.xlu0 %767
    %770 = vset.pattern.permute.xlu0 0
    %771 = vperm.xlu0 %770, %v491
    %v772 = vpop.permute.xlu0 %771
    %v774 = vrot.slane %v730, 6
    %v775 = vrot.slane %v731, 6
    %v778 = vmul.f32 %v768, %v774
    %v779 = vmul.f32 %v772, %v775
    %v780 = vsub.f32 %v310, %v778
    %v781 = vsub.f32 %v311, %v779
    %782 = vset.pattern.permute.xlu0 1
    %783 = vperm.xlu0 %782, %v554
    %v784 = vpop.permute.xlu0 %783
    %786 = vset.pattern.permute.xlu0 1
    %787 = vperm.xlu0 %786, %v555
    %v788 = vpop.permute.xlu0 %787
    %v792 = vrot.slane %v761, 7
    %v793 = vrot.slane %v762, 7
    %v796 = vmul.f32 %v784, %v792
    %v797 = vmul.f32 %v788, %v793
    %v798 = vsub.f32 %v780, %v796
    %v799 = vsub.f32 %v781, %v797
    %800 = vset.pattern.permute.xlu0 2
    %801 = vperm.xlu0 %800, %v619
    %v802 = vpop.permute.xlu0 %801
    %804 = vset.pattern.permute.xlu0 2
    %805 = vperm.xlu0 %804, %v621
    %v806 = vpop.permute.xlu0 %805
    %v808 = vmul.f32 %v798, %v802
    %v809 = vmul.f32 %v799, %v806
    %vm810 = vcmask 124930
    %811 = vst.msk [vmem:[#allocation8] sm:$0x4] %vm810, %v808
    %812 = vst.msk [vmem:[#allocation8 + $0x4] sm:$0x4] %vm810, %v809
    %814 = vset.pattern.permute.xlu0 0
    %815 = vperm.xlu0 %814, %v496
    %v816 = vpop.permute.xlu0 %815
    %819 = vset.pattern.permute.xlu0 0
    %820 = vperm.xlu0 %819, %v497
    %v821 = vpop.permute.xlu0 %820
    %v823 = vrot.slane %v730, 5
    %v824 = vrot.slane %v731, 5
    %v827 = vmul.f32 %v816, %v823
    %v828 = vmul.f32 %v821, %v824
    %v829 = vsub.f32 %v310, %v827
    %v830 = vsub.f32 %v311, %v828
    %832 = vset.pattern.permute.xlu0 1
    %833 = vperm.xlu0 %832, %v576
    %v834 = vpop.permute.xlu0 %833
    %837 = vset.pattern.permute.xlu0 1
    %838 = vperm.xlu0 %837, %v577
    %v839 = vpop.permute.xlu0 %838
    %v841 = vrot.slane %v761, 6
    %v842 = vrot.slane %v762, 6
    %v845 = vmul.f32 %v834, %v841
    %v846 = vmul.f32 %v839, %v842
    %v847 = vsub.f32 %v829, %v845
    %v848 = vsub.f32 %v830, %v846
    %850 = vset.pattern.permute.xlu0 2
    %851 = vperm.xlu0 %850, %v664
    %v852 = vpop.permute.xlu0 %851
    %855 = vset.pattern.permute.xlu0 2
    %856 = vperm.xlu0 %855, %v665
    %v857 = vpop.permute.xlu0 %856
    %v861 = vrot.slane %v808, 7
    %v862 = vrot.slane %v809, 7
    %v865 = vmul.f32 %v852, %v861
    %v866 = vmul.f32 %v857, %v862
    %v867 = vsub.f32 %v847, %v865
    %v868 = vsub.f32 %v848, %v866
    %870 = vset.pattern.permute.xlu0 3
    %871 = vperm.xlu0 %870, %v719
    %v872 = vpop.permute.xlu0 %871
    %875 = vset.pattern.permute.xlu0 3
    %876 = vperm.xlu0 %875, %v721
    %v877 = vpop.permute.xlu0 %876
    %v879 = vmul.f32 %v867, %v872
    %v880 = vmul.f32 %v868, %v877
    %vm881 = vcmask 125955
    %882 = vst.msk [vmem:[#allocation8] sm:$0x8] %vm881, %v879
    %883 = vst.msk [vmem:[#allocation8 + $0x4] sm:$0x8] %vm881, %v880
    %vm884 = vcmask 125952
    %885 = vst.msk [vmem:[#allocation9] sm:$0xf] %vm884, %v306
    %886 = vst.msk [vmem:[#allocation9 + $0x4] sm:$0xf] %vm884, %v307
    // Predicated region
    $region26: #{tpu_custom_call.1} parent=1 // pred_check
      _
    $region27: #{tpu_custom_call.1} parent=1 // pred_check_branch
      %888 = sbr.rel (0) target = $region29
    $region28: #{tpu_custom_call.1} parent=1 // pred_region
      %s890 = ssub.s32 128, 128
      %891 = vsyncadd [#allocation4], %s890
      %s892 = sshll.u32 [#allocation8], 4
      %s893 = int_to_ptr.vmem [resolvable:$true] %s892
      %898 = dma.vmem_to_hbm [thread:$0]  %s893, 128, %s3, [#allocation4], 64, 64, 4
    $region29: #{tpu_custom_call.1} parent=1 // pred_fallthru
      _
    // Predicated region
    $region30: #{tpu_custom_call.1} parent=1 // pred_check
      _
    $region31: #{tpu_custom_call.1} parent=1 // pred_check_branch
      %900 = sbr.rel (0) target = $region33
    $region32: #{tpu_custom_call.1} parent=1 // pred_region
      %s902 = ssub.s32 128, 128
      %903 = vsyncadd [#allocation10], %s902
      %s904 = sshll.u32 [#allocation9], 4
      %s905 = int_to_ptr.vmem [resolvable:$true] %s904
      %910 = dma.vmem_to_hbm [thread:$0]  %s905, 128, %s4, [#allocation10], 64, 64, 4
    $region33: #{tpu_custom_call.1} parent=1 // pred_fallthru
      _
    // Predicated region
    $region34: #{tpu_custom_call.1} parent=1 // pred_check
      _
    $region35: #{tpu_custom_call.1} parent=1 // pred_check_branch
      %912 = sbr.rel (0) target = $region37
    $region36: #{tpu_custom_call.1} parent=1 // pred_region
      %913 = dma.done [#allocation4], 128
    $region37: #{tpu_custom_call.1} parent=1 // pred_fallthru
      _
    // Predicated region
    $region38: #{tpu_custom_call.1} parent=1 // pred_check
      _
    $region39: #{tpu_custom_call.1} parent=1 // pred_check_branch
      %915 = sbr.rel (0) target = $region41
    $region40: #{tpu_custom_call.1} parent=1 // pred_region
      %916 = dma.done [#allocation10], 128
    $region41: #{tpu_custom_call.1} parent=1 // pred_fallthru
      _
    %917 = vsyncpa [#allocation3], 1
    %918 = vsyncpa [#allocation6], 1
    %919 = vsyncpa [#allocation4], 1
    %920 = vsyncpa [#allocation10], 1

</llo_original>
